<compile_context>
chip_gen: v5e
topology: v5e:2x2
jax: 0.10.0
libtpu: 0.0.40
codegen_flags: <defaults>
</compile_context>

<pallas_src>
import numpy as np
import jax
import jax.numpy as jnp
from jax.experimental import pallas as pl
from jax.experimental.pallas import tpu as pltpu


_LANE = 128
_VMEM_LIMIT_BYTES = 32 * 1024 * 1024     # legal scoped-VMEM request on v5e/v6e/v7x
_SMALL_INPUT_BYTES = 4 * 1024 * 1024     # below this, use the single-step fast path


# ---------------------------------------------------------------------------
# Path 1: small inputs -- one grid step, whole tensor resident in VMEM.
# ---------------------------------------------------------------------------
def _select_small_kernel(mask_ref, x_ref, out_ref):
    # mask_ref: SMEM (6,) int32; x_ref: (12, H, W) VMEM; out_ref: (6, H, W) VMEM.
    for c in range(6):
        @pl.when(mask_ref[c] != 0)
        def _mixed(c=c):
            out_ref[c] = x_ref[c]           # bicubic plane

        @pl.when(mask_ref[c] == 0)
        def _keep(c=c):
            out_ref[c] = x_ref[c + 6]       # DH plane


def _mix_small(x_tif, mix_mask):
    _, H, W = x_tif.shape
    return pl.pallas_call(
        _select_small_kernel,
        out_shape=jax.ShapeDtypeStruct((6, H, W), x_tif.dtype),
        in_specs=[pl.BlockSpec(memory_space=pltpu.MemorySpace.SMEM),
                  pl.BlockSpec(memory_space=pltpu.MemorySpace.VMEM)],
        out_specs=pl.BlockSpec(memory_space=pltpu.MemorySpace.VMEM),
    )(mix_mask, x_tif)


# ---------------------------------------------------------------------------
# Path 2: large inputs -- scalar-prefetch gather-copy, tiled over (C, H, W).
# ---------------------------------------------------------------------------
def _gather_copy_kernel(mask_ref, x_ref, out_ref):
    # Channel selection already happened in the index_map; the body is a copy.
    del mask_ref
    out_ref[...] = x_ref[...]


def _tile_budget_bytes():
    """Per-tile VMEM budget, generation-aware (v7x only has 64 MiB physical)."""
    try:
        phys = int(pltpu.get_tpu_info().vmem_capacity_bytes)
    except Exception:
        phys = 64 * 1024 * 1024            # conservative fallback (v7x-sized)
    scoped = min(_VMEM_LIMIT_BYTES, phys // 2)
    # 4 live buffers (input x2 + output x2, double-buffered) + ~25% headroom.
    return max(1 << 20, (scoped - scoped // 4) // 4)


def _pick_tile(H, W, itemsize, budget):
    """(tH, tW): prefer full-W (contiguous, lane-dense) rows and tile H;
    fall back to tiling W in multiples of 128 when H cannot be tiled."""
    sub = {1: 32, 2: 16, 4: 8}.get(itemsize, 8)
    h_cands = [H] + [d for d in range(H - 1, 0, -1) if H % d == 0 and d % sub == 0]
    w_cands = [W] + [d for d in range(W - 1, 0, -1) if W % d == 0 and d % _LANE == 0]
    for tW in w_cands:
        for tH in h_cands:
            if tH * tW * itemsize <= budget:
                return tH, tW
    # TODO(synk): pathological shapes with no sublane-aligned divisors fall back
    # to the smallest legal tile even if it exceeds the per-tile budget.
    return h_cands[-1], w_cands[-1]


def _mix_tiled(x_tif, mix_mask):
    _, H, W = x_tif.shape
    dtype = x_tif.dtype
    itemsize = jnp.dtype(dtype).itemsize

    # Keep the lane axis a multiple of 128 so DMAs and stores stay lane-dense.
    Wp = -(-W // _LANE) * _LANE
    x_in = x_tif if Wp == W else jnp.pad(x_tif, ((0, 0), (0, 0), (0, Wp - W)))

    tH, tW = _pick_tile(H, Wp, itemsize, _tile_budget_bytes())
    grid = (6, H // tH, Wp // tW)

    def in_map(c, h, w, mask):
        # Source channel for output channel c: c (bicubic) if mask[c] else c+6 (DH).
        return (c + 6 * (1 - mask[c]), h, w)

    def out_map(c, h, w, mask):
        return (c, h, w)

    out = pl.pallas_call(
        _gather_copy_kernel,
        out_shape=jax.ShapeDtypeStruct((6, H, Wp), dtype),
        grid_spec=pltpu.PrefetchScalarGridSpec(
            num_scalar_prefetch=1,
            grid=grid,
            in_specs=[pl.BlockSpec((1, tH, tW), in_map)],
            out_specs=pl.BlockSpec((1, tH, tW), out_map),
        ),
        compiler_params=pltpu.CompilerParams(
            # All axes independent; 'parallel' lets v7x's two TensorCores split
            # the copy (load-bearing there, harmless on v5e/v6e).
            dimension_semantics=("parallel", "parallel", "parallel"),
            vmem_limit_bytes=_VMEM_LIMIT_BYTES),
        cost_estimate=pl.CostEstimate(
            flops=0, transcendentals=0,
            bytes_accessed=int(12 * H * Wp * itemsize)),
    )(mix_mask, x_in)
    return out if Wp == W else out[:, :, :W]


# ---------------------------------------------------------------------------
# Path 3: donated input -- alias output onto x_tif, HBM->HBM DMA of mixed
# channels only (2*n planes of HBM traffic instead of 12).
# ---------------------------------------------------------------------------
def _inplace_dma_kernel(mask_ref, x_hbm, out_hbm, sems):
    # x_hbm and out_hbm alias the same (12, H, W) HBM buffer.  Only the mixed
    # channels move: bicubic plane c -> result plane c + 6, as direct HBM->HBM
    # DMAs (no VMEM staging).  Start all copies first, then wait, so the DMA
    # engine overlaps them.
    for c in range(6):
        @pl.when(mask_ref[c] != 0)
        def _start(c=c):
            pltpu.make_async_copy(x_hbm.at[c], out_hbm.at[c + 6], sems.at[c]).start()
    for c in range(6):
        @pl.when(mask_ref[c] != 0)
        def _wait(c=c):
            pltpu.make_async_copy(x_hbm.at[c], out_hbm.at[c + 6], sems.at[c]).wait()


def mix_channel_pallas_inplace(x_tif, mix_mask):
    """In-place / donating variant (highest-value perf-review item).

    Returns a (12, H, W) array aliased onto ``x_tif`` whose channels 6:12 hold
    the module's result (channels 0:6 keep the bicubic planes untouched).  Run
    under ``jax.jit(..., donate_argnums=(0,))`` so XLA reuses the input buffer;
    HBM traffic is then 2*n planes (n = number of mixed channels) instead of 12.
    """
    C12, H, W = x_tif.shape
    assert C12 == 12, "expected 6 bicubic + 6 DH channels"
    return pl.pallas_call(
        _inplace_dma_kernel,
        out_shape=jax.ShapeDtypeStruct((12, H, W), x_tif.dtype),
        in_specs=[pl.BlockSpec(memory_space=pltpu.MemorySpace.SMEM),
                  pl.BlockSpec(memory_space=pl.ANY)],
        out_specs=pl.BlockSpec(memory_space=pl.ANY),
        scratch_shapes=[pltpu.SemaphoreType.DMA((6,))],
        input_output_aliases={1: 0},      # x_tif (call arg 1) aliases output 0
    )(mix_mask, x_tif)


# ---------------------------------------------------------------------------
# Public wrapper + host-side mask generation (replicates the module's RNG).
# ---------------------------------------------------------------------------
def mix_channel_pallas(x_tif, mix_mask, *, force_tiled=False):
    """x_tif: (12, H, W) array. mix_mask: (6,) int32 (1 = take bicubic channel)."""
    C12, H, W = x_tif.shape
    assert C12 == 12, "expected 6 bicubic + 6 DH channels"
    itemsize = jnp.dtype(x_tif.dtype).itemsize
    if not force_tiled and 12 * H * W * itemsize <= _SMALL_INPUT_BYTES:
        return _mix_small(x_tif, mix_mask)
    return _mix_tiled(x_tif, mix_mask)


def make_mix_mask(p=1, seed=0):
    """Replicates the module's host-side numpy randomness, deterministically."""
    rng = np.random.default_rng(seed)
    eps = rng.random()
    mask = np.zeros((6,), dtype=np.int32)
    if p > eps:
        n = rng.integers(1, 5)                       # np.random.randint(1, 5)
        channels2mix = rng.choice(6, n, replace=False)
        mask[channels2mix] = 1
    # NOTE: if p <= eps the original module hits an UnboundLocalError; we
    # instead return the identity (all-DH) mask.
    return jnp.asarray(mask), eps, mask


if __name__ == "__main__":
    mix_mask, eps, mask_np = make_mix_mask(p=1, seed=0)
    sel = mask_np.astype(bool)

    def ref_forward(x_np):
        res = x_np[6:].copy()
        res[sel] = x_np[:6][sel]
        return res

    # 1) small input -> single-grid-step fast path.
    x_small = jax.random.normal(jax.random.PRNGKey(0), (12, 16, 128), dtype=jnp.float32)
    out_small = jax.block_until_ready(mix_channel_pallas(x_small, mix_mask))
    np.testing.assert_allclose(np.asarray(out_small),
                               ref_forward(np.asarray(x_small)), rtol=0, atol=0)

    # 2) tiled gather-copy path (also exercises lane padding: W=200 -> 256).
    x_big = jax.random.normal(jax.random.PRNGKey(1), (12, 64, 200), dtype=jnp.float32)
    out_big = jax.block_until_ready(
        mix_channel_pallas(x_big, mix_mask, force_tiled=True))
    np.testing.assert_allclose(np.asarray(out_big),
                               ref_forward(np.asarray(x_big)), rtol=0, atol=0)

    # 3) donated / in-place HBM->HBM DMA variant (result lives in channels 6:12).
    inplace = jax.jit(mix_channel_pallas_inplace, donate_argnums=(0,))
    out12 = jax.block_until_ready(inplace(jnp.array(x_small), mix_mask))
    np.testing.assert_allclose(np.asarray(out12)[6:],
                               ref_forward(np.asarray(x_small)), rtol=0, atol=0)

    print("KERNEL_OK")
</pallas_src>

<mosaic_0001>
module attributes {stable_mosaic.version = 11 : i64} {
  func.func @_select_small_kernel(%arg0: memref<6xi32, #tpu.memory_space<smem>>, %arg1: memref<12x16x128xf32, #tpu.memory_space<vmem>>, %arg2: memref<6x16x128xf32, #tpu.memory_space<vmem>>) attributes {dimension_semantics = [], scalar_prefetch = 0 : i64, scratch_operands = 0 : i64, tpu.core_type = #tpu.core_type<tc>} {
    %c0 = arith.constant 0 : index
    %0 = memref.load %arg0[%c0] : memref<6xi32, #tpu.memory_space<smem>>
    %c0_i32 = arith.constant 0 : i32
    %1 = arith.cmpi ne, %0, %c0_i32 : i32
    %2 = arith.extui %1 : i1 to i32
    %c0_i32_0 = arith.constant 0 : i32
    %3 = arith.cmpi ne, %2, %c0_i32_0 : i32
    scf.if %3 {
      %c0_29 = arith.constant 0 : index
      %c0_30 = arith.constant 0 : index
      %c0_31 = arith.constant 0 : index
      %48 = vector.load %arg1[%c0_29, %c0_30, %c0_31] : memref<12x16x128xf32, #tpu.memory_space<vmem>>, vector<1x16x128xf32>
      %49 = vector.shape_cast %48 : vector<1x16x128xf32> to vector<16x128xf32>
      %c0_32 = arith.constant 0 : index
      %c0_33 = arith.constant 0 : index
      %c0_34 = arith.constant 0 : index
      %50 = vector.load %arg2[%c0_32, %c0_33, %c0_34] : memref<6x16x128xf32, #tpu.memory_space<vmem>>, vector<1x16x128xf32>
      %51 = vector.shape_cast %50 : vector<1x16x128xf32> to vector<16x128xf32>
      %52 = vector.shape_cast %49 : vector<16x128xf32> to vector<1x16x128xf32>
      tpu.vector_store %arg2[%c0_32, %c0_33, %c0_34], %52 {strides = array<i32>} : memref<6x16x128xf32, #tpu.memory_space<vmem>>, vector<1x16x128xf32>,
    } else {
    }
    %c0_1 = arith.constant 0 : index
    %4 = memref.load %arg0[%c0_1] : memref<6xi32, #tpu.memory_space<smem>>
    %c0_i32_2 = arith.constant 0 : i32
    %5 = arith.cmpi eq, %4, %c0_i32_2 : i32
    %6 = arith.extui %5 : i1 to i32
    %c0_i32_3 = arith.constant 0 : i32
    %7 = arith.cmpi ne, %6, %c0_i32_3 : i32
    scf.if %7 {
      %c6 = arith.constant 6 : index
      %c0_29 = arith.constant 0 : index
      %c0_30 = arith.constant 0 : index
      %48 = vector.load %arg1[%c6, %c0_29, %c0_30] : memref<12x16x128xf32, #tpu.memory_space<vmem>>, vector<1x16x128xf32>
      %49 = vector.shape_cast %48 : vector<1x16x128xf32> to vector<16x128xf32>
      %c0_31 = arith.constant 0 : index
      %c0_32 = arith.constant 0 : index
      %c0_33 = arith.constant 0 : index
      %50 = vector.load %arg2[%c0_31, %c0_32, %c0_33] : memref<6x16x128xf32, #tpu.memory_space<vmem>>, vector<1x16x128xf32>
      %51 = vector.shape_cast %50 : vector<1x16x128xf32> to vector<16x128xf32>
      %52 = vector.shape_cast %49 : vector<16x128xf32> to vector<1x16x128xf32>
      tpu.vector_store %arg2[%c0_31, %c0_32, %c0_33], %52 {strides = array<i32>} : memref<6x16x128xf32, #tpu.memory_space<vmem>>, vector<1x16x128xf32>,
    } else {
    }
    %c1 = arith.constant 1 : index
    %8 = memref.load %arg0[%c1] : memref<6xi32, #tpu.memory_space<smem>>
    %c0_i32_4 = arith.constant 0 : i32
    %9 = arith.cmpi ne, %8, %c0_i32_4 : i32
    %10 = arith.extui %9 : i1 to i32
    %c0_i32_5 = arith.constant 0 : i32
    %11 = arith.cmpi ne, %10, %c0_i32_5 : i32
    scf.if %11 {
      %c1_29 = arith.constant 1 : index
      %c0_30 = arith.constant 0 : index
      %c0_31 = arith.constant 0 : index
      %48 = vector.load %arg1[%c1_29, %c0_30, %c0_31] : memref<12x16x128xf32, #tpu.memory_space<vmem>>, vector<1x16x128xf32>
      %49 = vector.shape_cast %48 : vector<1x16x128xf32> to vector<16x128xf32>
      %c1_32 = arith.constant 1 : index
      %c0_33 = arith.constant 0 : index
      %c0_34 = arith.constant 0 : index
      %50 = vector.load %arg2[%c1_32, %c0_33, %c0_34] : memref<6x16x128xf32, #tpu.memory_space<vmem>>, vector<1x16x128xf32>
      %51 = vector.shape_cast %50 : vector<1x16x128xf32> to vector<16x128xf32>
      %52 = vector.shape_cast %49 : vector<16x128xf32> to vector<1x16x128xf32>
      tpu.vector_store %arg2[%c1_32, %c0_33, %c0_34], %52 {strides = array<i32>} : memref<6x16x128xf32, #tpu.memory_space<vmem>>, vector<1x16x128xf32>,
    } else {
    }
    %c1_6 = arith.constant 1 : index
    %12 = memref.load %arg0[%c1_6] : memref<6xi32, #tpu.memory_space<smem>>
    %c0_i32_7 = arith.constant 0 : i32
    %13 = arith.cmpi eq, %12, %c0_i32_7 : i32
    %14 = arith.extui %13 : i1 to i32
    %c0_i32_8 = arith.constant 0 : i32
    %15 = arith.cmpi ne, %14, %c0_i32_8 : i32
    scf.if %15 {
      %c7 = arith.constant 7 : index
      %c0_29 = arith.constant 0 : index
      %c0_30 = arith.constant 0 : index
      %48 = vector.load %arg1[%c7, %c0_29, %c0_30] : memref<12x16x128xf32, #tpu.memory_space<vmem>>, vector<1x16x128xf32>
      %49 = vector.shape_cast %48 : vector<1x16x128xf32> to vector<16x128xf32>
      %c1_31 = arith.constant 1 : index
      %c0_32 = arith.constant 0 : index
      %c0_33 = arith.constant 0 : index
      %50 = vector.load %arg2[%c1_31, %c0_32, %c0_33] : memref<6x16x128xf32, #tpu.memory_space<vmem>>, vector<1x16x128xf32>
      %51 = vector.shape_cast %50 : vector<1x16x128xf32> to vector<16x128xf32>
      %52 = vector.shape_cast %49 : vector<16x128xf32> to vector<1x16x128xf32>
      tpu.vector_store %arg2[%c1_31, %c0_32, %c0_33], %52 {strides = array<i32>} : memref<6x16x128xf32, #tpu.memory_space<vmem>>, vector<1x16x128xf32>,
    } else {
    }
    %c2 = arith.constant 2 : index
    %16 = memref.load %arg0[%c2] : memref<6xi32, #tpu.memory_space<smem>>
    %c0_i32_9 = arith.constant 0 : i32
    %17 = arith.cmpi ne, %16, %c0_i32_9 : i32
    %18 = arith.extui %17 : i1 to i32
    %c0_i32_10 = arith.constant 0 : i32
    %19 = arith.cmpi ne, %18, %c0_i32_10 : i32
    scf.if %19 {
      %c2_29 = arith.constant 2 : index
      %c0_30 = arith.constant 0 : index
      %c0_31 = arith.constant 0 : index
      %48 = vector.load %arg1[%c2_29, %c0_30, %c0_31] : memref<12x16x128xf32, #tpu.memory_space<vmem>>, vector<1x16x128xf32>
      %49 = vector.shape_cast %48 : vector<1x16x128xf32> to vector<16x128xf32>
      %c2_32 = arith.constant 2 : index
      %c0_33 = arith.constant 0 : index
      %c0_34 = arith.constant 0 : index
      %50 = vector.load %arg2[%c2_32, %c0_33, %c0_34] : memref<6x16x128xf32, #tpu.memory_space<vmem>>, vector<1x16x128xf32>
      %51 = vector.shape_cast %50 : vector<1x16x128xf32> to vector<16x128xf32>
      %52 = vector.shape_cast %49 : vector<16x128xf32> to vector<1x16x128xf32>
      tpu.vector_store %arg2[%c2_32, %c0_33, %c0_34], %52 {strides = array<i32>} : memref<6x16x128xf32, #tpu.memory_space<vmem>>, vector<1x16x128xf32>,
    } else {
    }
    %c2_11 = arith.constant 2 : index
    %20 = memref.load %arg0[%c2_11] : memref<6xi32, #tpu.memory_space<smem>>
    %c0_i32_12 = arith.constant 0 : i32
    %21 = arith.cmpi eq, %20, %c0_i32_12 : i32
    %22 = arith.extui %21 : i1 to i32
    %c0_i32_13 = arith.constant 0 : i32
    %23 = arith.cmpi ne, %22, %c0_i32_13 : i32
    scf.if %23 {
      %c8 = arith.constant 8 : index
      %c0_29 = arith.constant 0 : index
      %c0_30 = arith.constant 0 : index
      %48 = vector.load %arg1[%c8, %c0_29, %c0_30] : memref<12x16x128xf32, #tpu.memory_space<vmem>>, vector<1x16x128xf32>
      %49 = vector.shape_cast %48 : vector<1x16x128xf32> to vector<16x128xf32>
      %c2_31 = arith.constant 2 : index
      %c0_32 = arith.constant 0 : index
      %c0_33 = arith.constant 0 : index
      %50 = vector.load %arg2[%c2_31, %c0_32, %c0_33] : memref<6x16x128xf32, #tpu.memory_space<vmem>>, vector<1x16x128xf32>
      %51 = vector.shape_cast %50 : vector<1x16x128xf32> to vector<16x128xf32>
      %52 = vector.shape_cast %49 : vector<16x128xf32> to vector<1x16x128xf32>
      tpu.vector_store %arg2[%c2_31, %c0_32, %c0_33], %52 {strides = array<i32>} : memref<6x16x128xf32, #tpu.memory_space<vmem>>, vector<1x16x128xf32>,
    } else {
    }
    %c3 = arith.constant 3 : index
    %24 = memref.load %arg0[%c3] : memref<6xi32, #tpu.memory_space<smem>>
    %c0_i32_14 = arith.constant 0 : i32
    %25 = arith.cmpi ne, %24, %c0_i32_14 : i32
    %26 = arith.extui %25 : i1 to i32
    %c0_i32_15 = arith.constant 0 : i32
    %27 = arith.cmpi ne, %26, %c0_i32_15 : i32
    scf.if %27 {
      %c3_29 = arith.constant 3 : index
      %c0_30 = arith.constant 0 : index
      %c0_31 = arith.constant 0 : index
      %48 = vector.load %arg1[%c3_29, %c0_30, %c0_31] : memref<12x16x128xf32, #tpu.memory_space<vmem>>, vector<1x16x128xf32>
      %49 = vector.shape_cast %48 : vector<1x16x128xf32> to vector<16x128xf32>
      %c3_32 = arith.constant 3 : index
      %c0_33 = arith.constant 0 : index
      %c0_34 = arith.constant 0 : index
      %50 = vector.load %arg2[%c3_32, %c0_33, %c0_34] : memref<6x16x128xf32, #tpu.memory_space<vmem>>, vector<1x16x128xf32>
      %51 = vector.shape_cast %50 : vector<1x16x128xf32> to vector<16x128xf32>
      %52 = vector.shape_cast %49 : vector<16x128xf32> to vector<1x16x128xf32>
      tpu.vector_store %arg2[%c3_32, %c0_33, %c0_34], %52 {strides = array<i32>} : memref<6x16x128xf32, #tpu.memory_space<vmem>>, vector<1x16x128xf32>,
    } else {
    }
    %c3_16 = arith.constant 3 : index
    %28 = memref.load %arg0[%c3_16] : memref<6xi32, #tpu.memory_space<smem>>
    %c0_i32_17 = arith.constant 0 : i32
    %29 = arith.cmpi eq, %28, %c0_i32_17 : i32
    %30 = arith.extui %29 : i1 to i32
    %c0_i32_18 = arith.constant 0 : i32
    %31 = arith.cmpi ne, %30, %c0_i32_18 : i32
    scf.if %31 {
      %c9 = arith.constant 9 : index
      %c0_29 = arith.constant 0 : index
      %c0_30 = arith.constant 0 : index
      %48 = vector.load %arg1[%c9, %c0_29, %c0_30] : memref<12x16x128xf32, #tpu.memory_space<vmem>>, vector<1x16x128xf32>
      %49 = vector.shape_cast %48 : vector<1x16x128xf32> to vector<16x128xf32>
      %c3_31 = arith.constant 3 : index
      %c0_32 = arith.constant 0 : index
      %c0_33 = arith.constant 0 : index
      %50 = vector.load %arg2[%c3_31, %c0_32, %c0_33] : memref<6x16x128xf32, #tpu.memory_space<vmem>>, vector<1x16x128xf32>
      %51 = vector.shape_cast %50 : vector<1x16x128xf32> to vector<16x128xf32>
      %52 = vector.shape_cast %49 : vector<16x128xf32> to vector<1x16x128xf32>
      tpu.vector_store %arg2[%c3_31, %c0_32, %c0_33], %52 {strides = array<i32>} : memref<6x16x128xf32, #tpu.memory_space<vmem>>, vector<1x16x128xf32>,
    } else {
    }
    %c4 = arith.constant 4 : index
    %32 = memref.load %arg0[%c4] : memref<6xi32, #tpu.memory_space<smem>>
    %c0_i32_19 = arith.constant 0 : i32
    %33 = arith.cmpi ne, %32, %c0_i32_19 : i32
    %34 = arith.extui %33 : i1 to i32
    %c0_i32_20 = arith.constant 0 : i32
    %35 = arith.cmpi ne, %34, %c0_i32_20 : i32
    scf.if %35 {
      %c4_29 = arith.constant 4 : index
      %c0_30 = arith.constant 0 : index
      %c0_31 = arith.constant 0 : index
      %48 = vector.load %arg1[%c4_29, %c0_30, %c0_31] : memref<12x16x128xf32, #tpu.memory_space<vmem>>, vector<1x16x128xf32>
      %49 = vector.shape_cast %48 : vector<1x16x128xf32> to vector<16x128xf32>
      %c4_32 = arith.constant 4 : index
      %c0_33 = arith.constant 0 : index
      %c0_34 = arith.constant 0 : index
      %50 = vector.load %arg2[%c4_32, %c0_33, %c0_34] : memref<6x16x128xf32, #tpu.memory_space<vmem>>, vector<1x16x128xf32>
      %51 = vector.shape_cast %50 : vector<1x16x128xf32> to vector<16x128xf32>
      %52 = vector.shape_cast %49 : vector<16x128xf32> to vector<1x16x128xf32>
      tpu.vector_store %arg2[%c4_32, %c0_33, %c0_34], %52 {strides = array<i32>} : memref<6x16x128xf32, #tpu.memory_space<vmem>>, vector<1x16x128xf32>,
    } else {
    }
    %c4_21 = arith.constant 4 : index
    %36 = memref.load %arg0[%c4_21] : memref<6xi32, #tpu.memory_space<smem>>
    %c0_i32_22 = arith.constant 0 : i32
    %37 = arith.cmpi eq, %36, %c0_i32_22 : i32
    %38 = arith.extui %37 : i1 to i32
    %c0_i32_23 = arith.constant 0 : i32
    %39 = arith.cmpi ne, %38, %c0_i32_23 : i32
    scf.if %39 {
      %c10 = arith.constant 10 : index
      %c0_29 = arith.constant 0 : index
      %c0_30 = arith.constant 0 : index
      %48 = vector.load %arg1[%c10, %c0_29, %c0_30] : memref<12x16x128xf32, #tpu.memory_space<vmem>>, vector<1x16x128xf32>
      %49 = vector.shape_cast %48 : vector<1x16x128xf32> to vector<16x128xf32>
      %c4_31 = arith.constant 4 : index
      %c0_32 = arith.constant 0 : index
      %c0_33 = arith.constant 0 : index
      %50 = vector.load %arg2[%c4_31, %c0_32, %c0_33] : memref<6x16x128xf32, #tpu.memory_space<vmem>>, vector<1x16x128xf32>
      %51 = vector.shape_cast %50 : vector<1x16x128xf32> to vector<16x128xf32>
      %52 = vector.shape_cast %49 : vector<16x128xf32> to vector<1x16x128xf32>
      tpu.vector_store %arg2[%c4_31, %c0_32, %c0_33], %52 {strides = array<i32>} : memref<6x16x128xf32, #tpu.memory_space<vmem>>, vector<1x16x128xf32>,
    } else {
    }
    %c5 = arith.constant 5 : index
    %40 = memref.load %arg0[%c5] : memref<6xi32, #tpu.memory_space<smem>>
    %c0_i32_24 = arith.constant 0 : i32
    %41 = arith.cmpi ne, %40, %c0_i32_24 : i32
    %42 = arith.extui %41 : i1 to i32
    %c0_i32_25 = arith.constant 0 : i32
    %43 = arith.cmpi ne, %42, %c0_i32_25 : i32
    scf.if %43 {
      %c5_29 = arith.constant 5 : index
      %c0_30 = arith.constant 0 : index
      %c0_31 = arith.constant 0 : index
      %48 = vector.load %arg1[%c5_29, %c0_30, %c0_31] : memref<12x16x128xf32, #tpu.memory_space<vmem>>, vector<1x16x128xf32>
      %49 = vector.shape_cast %48 : vector<1x16x128xf32> to vector<16x128xf32>
      %c5_32 = arith.constant 5 : index
      %c0_33 = arith.constant 0 : index
      %c0_34 = arith.constant 0 : index
      %50 = vector.load %arg2[%c5_32, %c0_33, %c0_34] : memref<6x16x128xf32, #tpu.memory_space<vmem>>, vector<1x16x128xf32>
      %51 = vector.shape_cast %50 : vector<1x16x128xf32> to vector<16x128xf32>
      %52 = vector.shape_cast %49 : vector<16x128xf32> to vector<1x16x128xf32>
      tpu.vector_store %arg2[%c5_32, %c0_33, %c0_34], %52 {strides = array<i32>} : memref<6x16x128xf32, #tpu.memory_space<vmem>>, vector<1x16x128xf32>,
    } else {
    }
    %c5_26 = arith.constant 5 : index
    %44 = memref.load %arg0[%c5_26] : memref<6xi32, #tpu.memory_space<smem>>
    %c0_i32_27 = arith.constant 0 : i32
    %45 = arith.cmpi eq, %44, %c0_i32_27 : i32
    %46 = arith.extui %45 : i1 to i32
    %c0_i32_28 = arith.constant 0 : i32
    %47 = arith.cmpi ne, %46, %c0_i32_28 : i32
    scf.if %47 {
      %c11 = arith.constant 11 : index
      %c0_29 = arith.constant 0 : index
      %c0_30 = arith.constant 0 : index
      %48 = vector.load %arg1[%c11, %c0_29, %c0_30] : memref<12x16x128xf32, #tpu.memory_space<vmem>>, vector<1x16x128xf32>
      %49 = vector.shape_cast %48 : vector<1x16x128xf32> to vector<16x128xf32>
      %c5_31 = arith.constant 5 : index
      %c0_32 = arith.constant 0 : index
      %c0_33 = arith.constant 0 : index
      %50 = vector.load %arg2[%c5_31, %c0_32, %c0_33] : memref<6x16x128xf32, #tpu.memory_space<vmem>>, vector<1x16x128xf32>
      %51 = vector.shape_cast %50 : vector<1x16x128xf32> to vector<16x128xf32>
      %52 = vector.shape_cast %49 : vector<16x128xf32> to vector<1x16x128xf32>
      tpu.vector_store %arg2[%c5_31, %c0_32, %c0_33], %52 {strides = array<i32>} : memref<6x16x128xf32, #tpu.memory_space<vmem>>, vector<1x16x128xf32>,
    } else {
    }
    return
  }
}

</mosaic_0001>

<llo_original>
// kernel: tpu_custom_call.1
$region0: #{tpu_custom_call.1}
  #allocation0 [shape = 'u32[]', space=smem, size = 0x4, offset = 0x4, fixed_abs, tag = 'smem constant byte address 0x4 - core index']
  #allocation1 [shape = 'u32[72,128]{1,0:T(1,128)}', space=vmem, size = 0x9000, scoped, tag = 'internal scratch']
  %s0 = inlined_call_operand.hbm [shape: s32[6], index: 0, kind: input, shape index: {}]
  %s1 = inlined_call_operand.hbm [shape: f32[12,16,128], index: 1, kind: input, shape index: {}]
  %s2 = inlined_call_operand.hbm [shape: f32[6,16,128], index: 2, kind: output, shape index: {}]
  %s3 = sld [smem:[#allocation0]]
  $region74: #{tpu_custom_call.1} parent=0
    _
  %s5 = ssub.s32 1, %s3
  %s6 = scalar_select 0, %s5, %s3
  $region1: #{tpu_custom_call.1} parent=0
    #allocation2 [shape = 'u8[512]{0}', space=smem, size = 0x200, scoped, tag = 'input window, operand 0, single buffered']
    #allocation3 [shape = 's32[1]{0}', space=sflag, size = 0x4, scoped, tag = 'scoped memory for tpu_custom_call.1']
    #allocation4 [shape = 's32[1]{0}', space=sflag, size = 0x4, scoped, tag = 'scoped memory for tpu_custom_call.1']
    #allocation5 [shape = 's32[1]{0}', space=sflag, size = 0x4, scoped, tag = 'scoped memory for tpu_custom_call.1']
    #allocation6 [shape = 'u8[98304]{0}', space=vmem, size = 0x18000, scoped, tag = 'input window, operand 1, single buffered']
    #allocation7 [shape = 'u8[49152]{0}', space=vmem, size = 0xc000, scoped, tag = 'output window, operand 0, single buffered']
    %7 = vsyncpa [#allocation5], 0
    %8 = vsyncpa [#allocation3], 0
    %9 = vsyncpa [#allocation4], 0
    // Predicated region
    $region2: #{tpu_custom_call.1} parent=1 // pred_check
      _
    $region3: #{tpu_custom_call.1} parent=1 // pred_check_branch
      %11 = sbr.rel (0) target = $region5
    $region4: #{tpu_custom_call.1} parent=1 // pred_region
      %13 = vsyncadd [#allocation5], 0
      %s15 = sshll.u32 %s0, 4
      %s16 = int_to_ptr.hbm [resolvable:$true] %s15
      %18 = dma.hbm_to_smem %s16, 16, [#allocation2], [#allocation5]
    $region5: #{tpu_custom_call.1} parent=1 // pred_fallthru
      _
    // Predicated region
    $region6: #{tpu_custom_call.1} parent=1 // pred_check
      _
    $region7: #{tpu_custom_call.1} parent=1 // pred_check_branch
      %20 = sbr.rel (0) target = $region9
    $region8: #{tpu_custom_call.1} parent=1 // pred_region
      %22 = vsyncadd [#allocation3], 0
      %s23 = sshll.u32 %s1, 4
      %s24 = int_to_ptr.hbm [resolvable:$true] %s23
      %s25 = sshll.u32 [#allocation6], 4
      %s26 = int_to_ptr.vmem [resolvable:$true] %s25
      %31 = dma.hbm_to_vmem [thread:$0]  %s24, 3072, %s26, [#allocation3], 128, 128, 8
    $region9: #{tpu_custom_call.1} parent=1 // pred_fallthru
      _
    // Predicated region
    $region10: #{tpu_custom_call.1} parent=1 // pred_check
      _
    $region11: #{tpu_custom_call.1} parent=1 // pred_check_branch
      %33 = sbr.rel (0) target = $region13
    $region12: #{tpu_custom_call.1} parent=1 // pred_region
      %35 = dma.done [#allocation5], 16
    $region13: #{tpu_custom_call.1} parent=1 // pred_fallthru
      _
    // Predicated region
    $region14: #{tpu_custom_call.1} parent=1 // pred_check
      _
    $region15: #{tpu_custom_call.1} parent=1 // pred_check_branch
      %37 = sbr.rel (0) target = $region17
    $region16: #{tpu_custom_call.1} parent=1 // pred_region
      %39 = dma.done [#allocation3], 3072
    $region17: #{tpu_custom_call.1} parent=1 // pred_fallthru
      _
    %40 = sfence
    %s41 = sld [smem:[#allocation2]]
    %p42 = scmp.ne.s32.totalorder %s41, 0
    // Predicated region
    $region18: #{tpu_custom_call.1} parent=1 // pred_check
      %p43 = pneg %p42
    $region19: #{tpu_custom_call.1} parent=1 // pred_check_branch
      %45 = sbr.rel (%p43) target = $region21
    $region20: #{tpu_custom_call.1} parent=1 // pred_region
      %v46 = vld [vmem:[#allocation6] sm:$0xff]
      %v47 = vld [vmem:[#allocation6 + $0x8] sm:$0xff]
      %48 = vst [vmem:[#allocation7] sm:$0xff] %v46
      %49 = vst [vmem:[#allocation7 + $0x8] sm:$0xff] %v47
    $region21: #{tpu_custom_call.1} parent=1 // pred_fallthru
      _
    %s50 = sld [smem:[#allocation2]]
    %p51 = scmp.eq.s32.totalorder %s50, 0
    // Predicated region
    $region22: #{tpu_custom_call.1} parent=1 // pred_check
      %p52 = pneg %p51
    $region23: #{tpu_custom_call.1} parent=1 // pred_check_branch
      %54 = sbr.rel (%p52) target = $region25
    $region24: #{tpu_custom_call.1} parent=1 // pred_region
      %s55 = scalar_lea.vmem [#allocation6], 96
      %v56 = vld [vmem:[%s55] sm:$0xff]
      %v57 = vld [vmem:[%s55 + $0x8] sm:$0xff]
      %58 = vst [vmem:[#allocation7] sm:$0xff] %v56
      %59 = vst [vmem:[#allocation7 + $0x8] sm:$0xff] %v57
    $region25: #{tpu_custom_call.1} parent=1 // pred_fallthru
      _
    %s60 = sld [smem:[#allocation2 + $0x1]]
    %p61 = scmp.ne.s32.totalorder %s60, 0
    // Predicated region
    $region26: #{tpu_custom_call.1} parent=1 // pred_check
      %p62 = pneg %p61
    $region27: #{tpu_custom_call.1} parent=1 // pred_check_branch
      %64 = sbr.rel (%p62) target = $region29
    $region28: #{tpu_custom_call.1} parent=1 // pred_region
      %s65 = scalar_lea.vmem [#allocation6], 16
      %v66 = vld [vmem:[%s65] sm:$0xff]
      %v67 = vld [vmem:[%s65 + $0x8] sm:$0xff]
      %s68 = scalar_lea.vmem [#allocation7], 16
      %69 = vst [vmem:[%s68] sm:$0xff] %v66
      %70 = vst [vmem:[%s68 + $0x8] sm:$0xff] %v67
    $region29: #{tpu_custom_call.1} parent=1 // pred_fallthru
      _
    %s71 = sld [smem:[#allocation2 + $0x1]]
    %p72 = scmp.eq.s32.totalorder %s71, 0
    // Predicated region
    $region30: #{tpu_custom_call.1} parent=1 // pred_check
      %p73 = pneg %p72
    $region31: #{tpu_custom_call.1} parent=1 // pred_check_branch
      %75 = sbr.rel (%p73) target = $region33
    $region32: #{tpu_custom_call.1} parent=1 // pred_region
      %s76 = scalar_lea.vmem [#allocation6], 112
      %v77 = vld [vmem:[%s76] sm:$0xff]
      %v78 = vld [vmem:[%s76 + $0x8] sm:$0xff]
      %s79 = scalar_lea.vmem [#allocation7], 16
      %80 = vst [vmem:[%s79] sm:$0xff] %v77
      %81 = vst [vmem:[%s79 + $0x8] sm:$0xff] %v78
    $region33: #{tpu_custom_call.1} parent=1 // pred_fallthru
      _
    %s82 = sld [smem:[#allocation2 + $0x2]]
    %p83 = scmp.ne.s32.totalorder %s82, 0
    // Predicated region
    $region34: #{tpu_custom_call.1} parent=1 // pred_check
      %p84 = pneg %p83
    $region35: #{tpu_custom_call.1} parent=1 // pred_check_branch
      %86 = sbr.rel (%p84) target = $region37
    $region36: #{tpu_custom_call.1} parent=1 // pred_region
      %s87 = scalar_lea.vmem [#allocation6], 32
      %v88 = vld [vmem:[%s87] sm:$0xff]
      %v89 = vld [vmem:[%s87 + $0x8] sm:$0xff]
      %s90 = scalar_lea.vmem [#allocation7], 32
      %91 = vst [vmem:[%s90] sm:$0xff] %v88
      %92 = vst [vmem:[%s90 + $0x8] sm:$0xff] %v89
    $region37: #{tpu_custom_call.1} parent=1 // pred_fallthru
      _
    %s93 = sld [smem:[#allocation2 + $0x2]]
    %p94 = scmp.eq.s32.totalorder %s93, 0
    // Predicated region
    $region38: #{tpu_custom_call.1} parent=1 // pred_check
      %p95 = pneg %p94
    $region39: #{tpu_custom_call.1} parent=1 // pred_check_branch
      %97 = sbr.rel (%p95) target = $region41
    $region40: #{tpu_custom_call.1} parent=1 // pred_region
      %s98 = scalar_lea.vmem [#allocation6], 128
      %v99 = vld [vmem:[%s98] sm:$0xff]
      %v100 = vld [vmem:[%s98 + $0x8] sm:$0xff]
      %s101 = scalar_lea.vmem [#allocation7], 32
      %102 = vst [vmem:[%s101] sm:$0xff] %v99
      %103 = vst [vmem:[%s101 + $0x8] sm:$0xff] %v100
    $region41: #{tpu_custom_call.1} parent=1 // pred_fallthru
      _
    %s104 = sld [smem:[#allocation2 + $0x3]]
    %p105 = scmp.ne.s32.totalorder %s104, 0
    // Predicated region
    $region42: #{tpu_custom_call.1} parent=1 // pred_check
      %p106 = pneg %p105
    $region43: #{tpu_custom_call.1} parent=1 // pred_check_branch
      %108 = sbr.rel (%p106) target = $region45
    $region44: #{tpu_custom_call.1} parent=1 // pred_region
      %s109 = scalar_lea.vmem [#allocation6], 48
      %v110 = vld [vmem:[%s109] sm:$0xff]
      %v111 = vld [vmem:[%s109 + $0x8] sm:$0xff]
      %s112 = scalar_lea.vmem [#allocation7], 48
      %113 = vst [vmem:[%s112] sm:$0xff] %v110
      %114 = vst [vmem:[%s112 + $0x8] sm:$0xff] %v111
    $region45: #{tpu_custom_call.1} parent=1 // pred_fallthru
      _
    %s115 = sld [smem:[#allocation2 + $0x3]]
    %p116 = scmp.eq.s32.totalorder %s115, 0
    // Predicated region
    $region46: #{tpu_custom_call.1} parent=1 // pred_check
      %p117 = pneg %p116
    $region47: #{tpu_custom_call.1} parent=1 // pred_check_branch
      %119 = sbr.rel (%p117) target = $region49
    $region48: #{tpu_custom_call.1} parent=1 // pred_region
      %s120 = scalar_lea.vmem [#allocation6], 144
      %v121 = vld [vmem:[%s120] sm:$0xff]
      %v122 = vld [vmem:[%s120 + $0x8] sm:$0xff]
      %s123 = scalar_lea.vmem [#allocation7], 48
      %124 = vst [vmem:[%s123] sm:$0xff] %v121
      %125 = vst [vmem:[%s123 + $0x8] sm:$0xff] %v122
    $region49: #{tpu_custom_call.1} parent=1 // pred_fallthru
      _
    %s126 = sld [smem:[#allocation2 + $0x4]]
    %p127 = scmp.ne.s32.totalorder %s126, 0
    // Predicated region
    $region50: #{tpu_custom_call.1} parent=1 // pred_check
      %p128 = pneg %p127
    $region51: #{tpu_custom_call.1} parent=1 // pred_check_branch
      %130 = sbr.rel (%p128) target = $region53
    $region52: #{tpu_custom_call.1} parent=1 // pred_region
      %s131 = scalar_lea.vmem [#allocation6], 64
      %v132 = vld [vmem:[%s131] sm:$0xff]
      %v133 = vld [vmem:[%s131 + $0x8] sm:$0xff]
      %s134 = scalar_lea.vmem [#allocation7], 64
      %135 = vst [vmem:[%s134] sm:$0xff] %v132
      %136 = vst [vmem:[%s134 + $0x8] sm:$0xff] %v133
    $region53: #{tpu_custom_call.1} parent=1 // pred_fallthru
      _
    %s137 = sld [smem:[#allocation2 + $0x4]]
    %p138 = scmp.eq.s32.totalorder %s137, 0
    // Predicated region
    $region54: #{tpu_custom_call.1} parent=1 // pred_check
      %p139 = pneg %p138
    $region55: #{tpu_custom_call.1} parent=1 // pred_check_branch
      %141 = sbr.rel (%p139) target = $region57
    $region56: #{tpu_custom_call.1} parent=1 // pred_region
      %s142 = scalar_lea.vmem [#allocation6], 160
      %v143 = vld [vmem:[%s142] sm:$0xff]
      %v144 = vld [vmem:[%s142 + $0x8] sm:$0xff]
      %s145 = scalar_lea.vmem [#allocation7], 64
      %146 = vst [vmem:[%s145] sm:$0xff] %v143
      %147 = vst [vmem:[%s145 + $0x8] sm:$0xff] %v144
    $region57: #{tpu_custom_call.1} parent=1 // pred_fallthru
      _
    %s148 = sld [smem:[#allocation2 + $0x5]]
    %p149 = scmp.ne.s32.totalorder %s148, 0
    // Predicated region
    $region58: #{tpu_custom_call.1} parent=1 // pred_check
      %p150 = pneg %p149
    $region59: #{tpu_custom_call.1} parent=1 // pred_check_branch
      %152 = sbr.rel (%p150) target = $region61
    $region60: #{tpu_custom_call.1} parent=1 // pred_region
      %s153 = scalar_lea.vmem [#allocation6], 80
      %v154 = vld [vmem:[%s153] sm:$0xff]
      %v155 = vld [vmem:[%s153 + $0x8] sm:$0xff]
      %s156 = scalar_lea.vmem [#allocation7], 80
      %157 = vst [vmem:[%s156] sm:$0xff] %v154
      %158 = vst [vmem:[%s156 + $0x8] sm:$0xff] %v155
    $region61: #{tpu_custom_call.1} parent=1 // pred_fallthru
      _
    %s159 = sld [smem:[#allocation2 + $0x5]]
    %p160 = scmp.eq.s32.totalorder %s159, 0
    // Predicated region
    $region62: #{tpu_custom_call.1} parent=1 // pred_check
      %p161 = pneg %p160
    $region63: #{tpu_custom_call.1} parent=1 // pred_check_branch
      %163 = sbr.rel (%p161) target = $region65
    $region64: #{tpu_custom_call.1} parent=1 // pred_region
      %s164 = scalar_lea.vmem [#allocation6], 176
      %v165 = vld [vmem:[%s164] sm:$0xff]
      %v166 = vld [vmem:[%s164 + $0x8] sm:$0xff]
      %s167 = scalar_lea.vmem [#allocation7], 80
      %168 = vst [vmem:[%s167] sm:$0xff] %v165
      %169 = vst [vmem:[%s167 + $0x8] sm:$0xff] %v166
    $region65: #{tpu_custom_call.1} parent=1 // pred_fallthru
      _
    // Predicated region
    $region66: #{tpu_custom_call.1} parent=1 // pred_check
      _
    $region67: #{tpu_custom_call.1} parent=1 // pred_check_branch
      %171 = sbr.rel (0) target = $region69
    $region68: #{tpu_custom_call.1} parent=1 // pred_region
      %173 = vsyncadd [#allocation4], 0
      %s174 = sshll.u32 [#allocation7], 4
      %s175 = int_to_ptr.vmem [resolvable:$true] %s174
      %s176 = sshll.u32 %s2, 4
      %s177 = int_to_ptr.hbm [resolvable:$true] %s176
      %182 = dma.vmem_to_hbm [thread:$0]  %s175, 1536, %s177, [#allocation4], 128, 128, 8
    $region69: #{tpu_custom_call.1} parent=1 // pred_fallthru
      _
    // Predicated region
    $region70: #{tpu_custom_call.1} parent=1 // pred_check
      _
    $region71: #{tpu_custom_call.1} parent=1 // pred_check_branch
      %184 = sbr.rel (0) target = $region73
    $region72: #{tpu_custom_call.1} parent=1 // pred_region
      %186 = dma.done [#allocation4], 1536
    $region73: #{tpu_custom_call.1} parent=1 // pred_fallthru
      _
    %187 = vsyncpa [#allocation3], 1
    %188 = vsyncpa [#allocation4], 1
    %189 = vsyncpa [#allocation5], 1

</llo_original>
